<compile_context>
chip_gen: v7x
topology: tpu7x:2x2x1
jax: 0.10.0
libtpu: 0.0.40
codegen_flags: <defaults>
</compile_context>

<pallas_src>
import functools

import jax
import jax.numpy as jnp
from jax.experimental import pallas as pl
from jax.experimental.pallas import tpu as pltpu

LN_EPS = 1e-5   # nn.LayerNorm default
_LANE = 128
_SUBLANE_F32 = 8
_SUBLANE_BF16 = 16


def _round_up(n, m):
    return ((n + m - 1) // m) * m


def _cdiv(a, b):
    return -(-a // b)


def _vmem_capacity_bytes():
    # Generation-aware VMEM capacity; conservative (v7x-sized) fallback if the
    # query is unavailable.
    try:
        return int(pltpu.get_tpu_info().vmem_capacity_bytes)
    except Exception:
        return 64 << 20


def _layernorm_padded(h, gamma, beta, inv_width):
    # Single-pass LayerNorm over a lane-padded feature axis.
    # Padded lanes of `h` are exactly 0 (zero-padded weight columns + zero bias),
    # so raw sums equal sums over the true feature width; dividing by the true
    # width (inv_width) keeps mean/variance exact.  Padded gamma/beta are 0, so
    # padded output lanes stay 0.
    # NOTE: E[x^2]-mu^2 can cancel if |mean| >> std; fine for LN after Linear
    # with xavier weights / zero bias (mean ~ 0).
    s1 = jnp.sum(h, axis=-1, keepdims=True)
    s2 = jnp.sum(h * h, axis=-1, keepdims=True)
    mu = s1 * inv_width
    var = jnp.maximum(s2 * inv_width - mu * mu, 0.0)
    inv = jax.lax.rsqrt(var + LN_EPS)
    return (h - mu) * inv * gamma + beta


def dqn_mlp_kernel(x_ref,
                   w1_ref, p1_ref,
                   w2_ref, p2_ref,
                   w3_ref, b3_ref,
                   o_ref, *, inv_hidden):
    x = x_ref[...]                      # (TB, Sx), matmul dtype (bf16 by default)
    p1 = p1_ref[...]                    # (3, Hp) f32: rows = bias, gamma, beta
    p2 = p2_ref[...]

    # Block 1: Linear -> LayerNorm -> ReLU -> (Dropout = identity in eval)
    h = jnp.dot(x, w1_ref[...], preferred_element_type=jnp.float32)
    h = h + p1[0:1, :]
    h = _layernorm_padded(h, p1[1:2, :], p1[2:3, :], inv_hidden)
    h = jnp.maximum(h, 0.0)

    # Block 2: Linear -> LayerNorm -> ReLU -> (Dropout = identity in eval)
    h = jnp.dot(h.astype(w2_ref.dtype), w2_ref[...],
                preferred_element_type=jnp.float32)
    h = h + p2[0:1, :]
    h = _layernorm_padded(h, p2[1:2, :], p2[2:3, :], inv_hidden)
    h = jnp.maximum(h, 0.0)

    # Output head: Linear
    q = jnp.dot(h.astype(w3_ref.dtype), w3_ref[...],
                preferred_element_type=jnp.float32)
    q = q + b3_ref[...]
    o_ref[...] = q.astype(o_ref.dtype)


def dqn_forward(x, padded_params, *, state_dim, hidden_dim, action_dim,
                block_batch=1024):
    """Fused forward pass of DQNNetwork (num_layers=3) as one batch-tiled Pallas call."""
    w1, p1, w2, p2, w3, b3 = padded_params
    mm_dtype = w1.dtype                 # matmul operand dtype (bf16 by default)
    Sx, Hp = w1.shape
    Ap = w3.shape[1]

    B = x.shape[0]
    sublane = _SUBLANE_BF16 if mm_dtype == jnp.bfloat16 else _SUBLANE_F32

    # Balanced batch tiles (minimal dead-row padding); force >=2 tiles when B is
    # large enough so v7x megacore ("parallel") has work for both TensorCores.
    n_tiles = _cdiv(B, block_batch)
    if B >= 2 * sublane:
        n_tiles = max(n_tiles, 2)
    TB = _round_up(_cdiv(B, n_tiles), sublane)
    B_pad = _round_up(B, TB)
    grid = (B_pad // TB,)

    # Only materialize a padded copy of x if we actually have to.
    x = x.astype(mm_dtype)
    if x.shape == (B_pad, Sx):
        xp = x
    else:
        xp = jnp.zeros((B_pad, Sx), dtype=mm_dtype)
        xp = xp.at[:B, :state_dim].set(x[:, :state_dim])

    # VMEM budget derived from actual footprints: resident params single-buffered
    # (Buffered(1)), x/out blocks double-buffered, f32 activation headroom.
    itemsize = jnp.dtype(mm_dtype).itemsize
    param_bytes = sum(int(a.size) * jnp.dtype(a.dtype).itemsize
                      for a in (w1, p1, w2, p2, w3, b3))
    io_bytes = 2 * (TB * Sx * itemsize + TB * Ap * 4)
    act_bytes = 4 * TB * Hp * 4
    vmem_cap = _vmem_capacity_bytes()
    vmem_bytes = param_bytes + io_bytes + act_bytes + (2 << 20)
    vmem_bytes = int(min(max(vmem_bytes, 4 << 20), (vmem_cap * 87) // 100))

    kernel = functools.partial(dqn_mlp_kernel, inv_hidden=1.0 / float(hidden_dim))

    def build(buffered_resident):
        def resident(shape):
            # Weight / param blocks: same block every grid step -> fetched once,
            # VMEM-resident across the whole batch sweep.  Single-buffered when
            # supported (constant index_map never needs a second buffer).
            kwargs = {}
            if buffered_resident:
                kwargs["pipeline_mode"] = pl.Buffered(1)
            return pl.BlockSpec(shape, lambda i: tuple(0 for _ in shape), **kwargs)

        return pl.pallas_call(
            kernel,
            out_shape=jax.ShapeDtypeStruct((B_pad, Ap), jnp.float32),
            grid=grid,
            in_specs=[
                pl.BlockSpec((TB, Sx), lambda i: (i, 0)),   # x: tiled over batch
                resident(w1.shape), resident(p1.shape),
                resident(w2.shape), resident(p2.shape),
                resident(w3.shape), resident(b3.shape),
            ],
            out_specs=pl.BlockSpec((TB, Ap), lambda i: (i, 0)),
            compiler_params=pltpu.CompilerParams(
                dimension_semantics=("parallel",),          # megacore sharding on v7x
                vmem_limit_bytes=vmem_bytes,
            ),
        )

    try:
        out = build(True)(xp, w1, p1, w2, p2, w3, b3)
    except Exception:
        # Fallback: default (double-buffered) resident blocks if Buffered(1) is
        # rejected by this JAX/Mosaic build.
        out = build(False)(xp, w1, p1, w2, p2, w3, b3)

    return out[:B, :action_dim]


# ---------------------------------------------------------------------------
# Parameter construction (matches PyTorch DQNNetwork._init_weights semantics).
# ---------------------------------------------------------------------------

def xavier_normal(key, fan_in, fan_out, gain=1.0):
    # Matches nn.init.xavier_normal_: std = gain * sqrt(2 / (fan_in + fan_out)).
    # Stored as [in, out] (transposed vs PyTorch's [out, in]) for x @ W.
    std = gain * (2.0 / (fan_in + fan_out)) ** 0.5
    return std * jax.random.normal(key, (fan_in, fan_out), dtype=jnp.float32)


def init_params(key, state_dim, hidden_dim, action_dim):
    """True-sized (unpadded) parameters, PyTorch-equivalent."""
    k1, k2, k3 = jax.random.split(key, 3)
    w1 = xavier_normal(k1, state_dim, hidden_dim)
    b1 = jnp.zeros((hidden_dim,), jnp.float32)
    g1 = jnp.ones((hidden_dim,), jnp.float32)
    be1 = jnp.zeros((hidden_dim,), jnp.float32)
    w2 = xavier_normal(k2, hidden_dim, hidden_dim)
    b2 = jnp.zeros((hidden_dim,), jnp.float32)
    g2 = jnp.ones((hidden_dim,), jnp.float32)
    be2 = jnp.zeros((hidden_dim,), jnp.float32)
    w3 = xavier_normal(k3, hidden_dim, action_dim)
    b3 = jnp.zeros((action_dim,), jnp.float32)
    return (w1, b1, g1, be1, w2, b2, g2, be2, w3, b3)


def pack_and_pad_params(params, state_dim, hidden_dim, action_dim,
                        matmul_dtype=jnp.bfloat16):
    """Pad hidden/action dims to 128 lanes, state dim only to the sublane,
    pack (bias, gamma, beta) per layer, and store matmul weights in `matmul_dtype`."""
    (w1, b1, g1, be1, w2, b2, g2, be2, w3, b3) = params
    Sx = _round_up(state_dim, _SUBLANE_BF16)    # sublane pad only (not 128)
    Hp = _round_up(hidden_dim, _LANE)
    Ap = _round_up(action_dim, _LANE)

    def pad_mat(w, rows, cols):
        out = jnp.zeros((rows, cols), jnp.float32)
        return out.at[:w.shape[0], :w.shape[1]].set(w).astype(matmul_dtype)

    def pack_vecs(b, g, be, cols):
        out = jnp.zeros((3, cols), jnp.float32)       # padded gamma/beta stay 0
        out = out.at[0, :b.shape[0]].set(b)
        out = out.at[1, :g.shape[0]].set(g)
        out = out.at[2, :be.shape[0]].set(be)
        return out

    w1p = pad_mat(w1, Sx, Hp)
    p1 = pack_vecs(b1, g1, be1, Hp)
    w2p = pad_mat(w2, Hp, Hp)
    p2 = pack_vecs(b2, g2, be2, Hp)
    w3p = pad_mat(w3, Hp, Ap)
    b3p = jnp.zeros((1, Ap), jnp.float32).at[0, :action_dim].set(b3)
    return (w1p, p1, w2p, p2, w3p, b3p)


def reference_forward(x, params):
    """Pure-JAX f32 reference on the true (unpadded) parameters."""
    (w1, b1, g1, be1, w2, b2, g2, be2, w3, b3) = params

    def ln(h, g, be):
        mu = jnp.mean(h, axis=-1, keepdims=True)
        var = jnp.mean((h - mu) ** 2, axis=-1, keepdims=True)
        return (h - mu) * jax.lax.rsqrt(var + LN_EPS) * g + be

    h = jnp.maximum(ln(x @ w1 + b1, g1, be1), 0.0)
    h = jnp.maximum(ln(h @ w2 + b2, g2, be2), 0.0)
    return h @ w3 + b3


if __name__ == "__main__":
    state_dim, action_dim, hidden_dim = 16, 8, 32
    batch = 8

    key = jax.random.PRNGKey(0)
    kx, kp = jax.random.split(key)
    x = jax.random.normal(kx, (batch, state_dim), dtype=jnp.float32)

    params = init_params(kp, state_dim, hidden_dim, action_dim)
    q_ref = reference_forward(x, params)

    # Default path: bf16 MXU matmuls (all generations), f32 accumulate + LN/ReLU.
    padded_bf16 = pack_and_pad_params(params, state_dim, hidden_dim, action_dim,
                                      matmul_dtype=jnp.bfloat16)
    q_bf16 = dqn_forward(x, padded_bf16,
                         state_dim=state_dim, hidden_dim=hidden_dim,
                         action_dim=action_dim)
    jax.block_until_ready(q_bf16)
    assert q_bf16.shape == (batch, action_dim)
    # bf16 operands -> looser tolerance vs the f32 reference (expected precision loss).
    assert jnp.allclose(q_bf16, q_ref, atol=5e-2, rtol=5e-2), "bf16 path mismatch vs reference"

    # Full-f32 path: bit-for-bit-class agreement with the reference.
    padded_f32 = pack_and_pad_params(params, state_dim, hidden_dim, action_dim,
                                     matmul_dtype=jnp.float32)
    q_f32 = dqn_forward(x, padded_f32,
                        state_dim=state_dim, hidden_dim=hidden_dim,
                        action_dim=action_dim)
    jax.block_until_ready(q_f32)
    assert q_f32.shape == (batch, action_dim)
    assert jnp.allclose(q_f32, q_ref, atol=1e-4, rtol=1e-4), "f32 path mismatch vs reference"

    print("KERNEL_OK")
</pallas_src>

<mosaic_0001>
module attributes {stable_mosaic.version = 11 : i64} {
  func.func @dqn_mlp_kernel(%arg0: i32, %arg1: memref<16x16xbf16, #tpu.memory_space<vmem>>, %arg2: memref<16x128xbf16, #tpu.memory_space<vmem>>, %arg3: memref<3x128xf32, #tpu.memory_space<vmem>>, %arg4: memref<128x128xbf16, #tpu.memory_space<vmem>>, %arg5: memref<3x128xf32, #tpu.memory_space<vmem>>, %arg6: memref<128x128xbf16, #tpu.memory_space<vmem>>, %arg7: memref<1x128xf32, #tpu.memory_space<vmem>>, %arg8: memref<16x128xf32, #tpu.memory_space<vmem>>) attributes {dimension_semantics = [#tpu.dimension_semantics<parallel>], iteration_bounds = array<i64: 1>, scalar_prefetch = 0 : i64, scratch_operands = 0 : i64, tpu.core_type = #tpu.core_type<tc>, window_params = [{transform_indices = @transform_0, window_bounds = array<i64: 16, 16>}, {pipeline_mode = #tpu.pipeline_mode<synchronous>, transform_indices = @transform_1, window_bounds = array<i64: 16, 128>}, {pipeline_mode = #tpu.pipeline_mode<synchronous>, transform_indices = @transform_2, window_bounds = array<i64: 3, 128>}, {pipeline_mode = #tpu.pipeline_mode<synchronous>, transform_indices = @transform_3, window_bounds = array<i64: 128, 128>}, {pipeline_mode = #tpu.pipeline_mode<synchronous>, transform_indices = @transform_4, window_bounds = array<i64: 3, 128>}, {pipeline_mode = #tpu.pipeline_mode<synchronous>, transform_indices = @transform_5, window_bounds = array<i64: 128, 128>}, {pipeline_mode = #tpu.pipeline_mode<synchronous>, transform_indices = @transform_6, window_bounds = array<i64: 1, 128>}, {transform_indices = @transform_7, window_bounds = array<i64: 16, 128>}]} {
    %c0 = arith.constant 0 : index
    %c0_0 = arith.constant 0 : index
    %0 = vector.load %arg1[%c0, %c0_0] : memref<16x16xbf16, #tpu.memory_space<vmem>>, vector<16x16xbf16>
    %c0_1 = arith.constant 0 : index
    %c0_2 = arith.constant 0 : index
    %1 = vector.load %arg3[%c0_1, %c0_2] : memref<3x128xf32, #tpu.memory_space<vmem>>, vector<3x128xf32>
    %c0_3 = arith.constant 0 : index
    %c0_4 = arith.constant 0 : index
    %2 = vector.load %arg5[%c0_3, %c0_4] : memref<3x128xf32, #tpu.memory_space<vmem>>, vector<3x128xf32>
    %c0_5 = arith.constant 0 : index
    %c0_6 = arith.constant 0 : index
    %3 = vector.load %arg2[%c0_5, %c0_6] : memref<16x128xbf16, #tpu.memory_space<vmem>>, vector<16x128xbf16>
    %cst = arith.constant dense<0.000000e+00> : vector<16x128xf32>
    %4 = tpu.matmul %0, %3, %cst {dimension_numbers = #tpu.dot_dimension_numbers<[1], [0], [0], [1], [0, 0, 1, 1], [], []>} : vector<16x16xbf16>, vector<16x128xbf16>, vector<16x128xf32> -> vector<16x128xf32>
    %5 = vector.extract_strided_slice %1 {offsets = [0, 0], sizes = [1, 128], strides = [1, 1]} : vector<3x128xf32> to vector<1x128xf32>
    %6 = vector.broadcast %5 : vector<1x128xf32> to vector<16x128xf32>
    %7 = arith.addf %4, %6 : vector<16x128xf32>
    %8 = vector.extract_strided_slice %1 {offsets = [1, 0], sizes = [1, 128], strides = [1, 1]} : vector<3x128xf32> to vector<1x128xf32>
    %9 = vector.extract_strided_slice %1 {offsets = [2, 0], sizes = [1, 128], strides = [1, 1]} : vector<3x128xf32> to vector<1x128xf32>
    %cst_7 = arith.constant dense<0.000000e+00> : vector<16xf32>
    %10 = vector.multi_reduction <add>, %7, %cst_7 [1] : vector<16x128xf32> to vector<16xf32>
    %11 = vector.shape_cast %10 : vector<16xf32> to vector<16x1xf32>
    %12 = arith.mulf %7, %7 : vector<16x128xf32>
    %cst_8 = arith.constant dense<0.000000e+00> : vector<16xf32>
    %13 = vector.multi_reduction <add>, %12, %cst_8 [1] : vector<16x128xf32> to vector<16xf32>
    %14 = vector.shape_cast %13 : vector<16xf32> to vector<16x1xf32>
    %cst_9 = arith.constant 3.125000e-02 : f32
    %15 = vector.broadcast %cst_9 : f32 to vector<16x1xf32>
    %16 = arith.mulf %11, %15 : vector<16x1xf32>
    %cst_10 = arith.constant 3.125000e-02 : f32
    %17 = vector.broadcast %cst_10 : f32 to vector<16x1xf32>
    %18 = arith.mulf %14, %17 : vector<16x1xf32>
    %19 = arith.mulf %16, %16 : vector<16x1xf32>
    %20 = arith.subf %18, %19 : vector<16x1xf32>
    %cst_11 = arith.constant 0.000000e+00 : f32
    %21 = vector.broadcast %cst_11 : f32 to vector<16x1xf32>
    %22 = arith.maximumf %20, %21 : vector<16x1xf32>
    %cst_12 = arith.constant 9.99999974E-6 : f32
    %23 = vector.broadcast %cst_12 : f32 to vector<16x1xf32>
    %24 = arith.addf %22, %23 : vector<16x1xf32>
    %25 = math.rsqrt %24 : vector<16x1xf32>
    %26 = vector.broadcast %16 : vector<16x1xf32> to vector<16x128xf32>
    %27 = arith.subf %7, %26 : vector<16x128xf32>
    %28 = vector.broadcast %25 : vector<16x1xf32> to vector<16x128xf32>
    %29 = arith.mulf %27, %28 : vector<16x128xf32>
    %30 = vector.broadcast %8 : vector<1x128xf32> to vector<16x128xf32>
    %31 = arith.mulf %29, %30 : vector<16x128xf32>
    %32 = vector.broadcast %9 : vector<1x128xf32> to vector<16x128xf32>
    %33 = arith.addf %31, %32 : vector<16x128xf32>
    %cst_13 = arith.constant 0.000000e+00 : f32
    %34 = vector.broadcast %cst_13 : f32 to vector<16x128xf32>
    %35 = arith.maximumf %33, %34 : vector<16x128xf32>
    %36 = arith.truncf %35 : vector<16x128xf32> to vector<16x128xbf16>
    %c0_14 = arith.constant 0 : index
    %c0_15 = arith.constant 0 : index
    %37 = vector.load %arg4[%c0_14, %c0_15] : memref<128x128xbf16, #tpu.memory_space<vmem>>, vector<128x128xbf16>
    %cst_16 = arith.constant dense<0.000000e+00> : vector<16x128xf32>
    %38 = tpu.matmul %36, %37, %cst_16 {dimension_numbers = #tpu.dot_dimension_numbers<[1], [0], [0], [1], [0, 0, 1, 1], [], []>} : vector<16x128xbf16>, vector<128x128xbf16>, vector<16x128xf32> -> vector<16x128xf32>
    %39 = vector.extract_strided_slice %2 {offsets = [0, 0], sizes = [1, 128], strides = [1, 1]} : vector<3x128xf32> to vector<1x128xf32>
    %40 = vector.broadcast %39 : vector<1x128xf32> to vector<16x128xf32>
    %41 = arith.addf %38, %40 : vector<16x128xf32>
    %42 = vector.extract_strided_slice %2 {offsets = [1, 0], sizes = [1, 128], strides = [1, 1]} : vector<3x128xf32> to vector<1x128xf32>
    %43 = vector.extract_strided_slice %2 {offsets = [2, 0], sizes = [1, 128], strides = [1, 1]} : vector<3x128xf32> to vector<1x128xf32>
    %cst_17 = arith.constant dense<0.000000e+00> : vector<16xf32>
    %44 = vector.multi_reduction <add>, %41, %cst_17 [1] : vector<16x128xf32> to vector<16xf32>
    %45 = vector.shape_cast %44 : vector<16xf32> to vector<16x1xf32>
    %46 = arith.mulf %41, %41 : vector<16x128xf32>
    %cst_18 = arith.constant dense<0.000000e+00> : vector<16xf32>
    %47 = vector.multi_reduction <add>, %46, %cst_18 [1] : vector<16x128xf32> to vector<16xf32>
    %48 = vector.shape_cast %47 : vector<16xf32> to vector<16x1xf32>
    %cst_19 = arith.constant 3.125000e-02 : f32
    %49 = vector.broadcast %cst_19 : f32 to vector<16x1xf32>
    %50 = arith.mulf %45, %49 : vector<16x1xf32>
    %cst_20 = arith.constant 3.125000e-02 : f32
    %51 = vector.broadcast %cst_20 : f32 to vector<16x1xf32>
    %52 = arith.mulf %48, %51 : vector<16x1xf32>
    %53 = arith.mulf %50, %50 : vector<16x1xf32>
    %54 = arith.subf %52, %53 : vector<16x1xf32>
    %cst_21 = arith.constant 0.000000e+00 : f32
    %55 = vector.broadcast %cst_21 : f32 to vector<16x1xf32>
    %56 = arith.maximumf %54, %55 : vector<16x1xf32>
    %cst_22 = arith.constant 9.99999974E-6 : f32
    %57 = vector.broadcast %cst_22 : f32 to vector<16x1xf32>
    %58 = arith.addf %56, %57 : vector<16x1xf32>
    %59 = math.rsqrt %58 : vector<16x1xf32>
    %60 = vector.broadcast %50 : vector<16x1xf32> to vector<16x128xf32>
    %61 = arith.subf %41, %60 : vector<16x128xf32>
    %62 = vector.broadcast %59 : vector<16x1xf32> to vector<16x128xf32>
    %63 = arith.mulf %61, %62 : vector<16x128xf32>
    %64 = vector.broadcast %42 : vector<1x128xf32> to vector<16x128xf32>
    %65 = arith.mulf %63, %64 : vector<16x128xf32>
    %66 = vector.broadcast %43 : vector<1x128xf32> to vector<16x128xf32>
    %67 = arith.addf %65, %66 : vector<16x128xf32>
    %cst_23 = arith.constant 0.000000e+00 : f32
    %68 = vector.broadcast %cst_23 : f32 to vector<16x128xf32>
    %69 = arith.maximumf %67, %68 : vector<16x128xf32>
    %70 = arith.truncf %69 : vector<16x128xf32> to vector<16x128xbf16>
    %c0_24 = arith.constant 0 : index
    %c0_25 = arith.constant 0 : index
    %71 = vector.load %arg6[%c0_24, %c0_25] : memref<128x128xbf16, #tpu.memory_space<vmem>>, vector<128x128xbf16>
    %cst_26 = arith.constant dense<0.000000e+00> : vector<16x128xf32>
    %72 = tpu.matmul %70, %71, %cst_26 {dimension_numbers = #tpu.dot_dimension_numbers<[1], [0], [0], [1], [0, 0, 1, 1], [], []>} : vector<16x128xbf16>, vector<128x128xbf16>, vector<16x128xf32> -> vector<16x128xf32>
    %c0_27 = arith.constant 0 : index
    %c0_28 = arith.constant 0 : index
    %73 = vector.load %arg7[%c0_27, %c0_28] : memref<1x128xf32, #tpu.memory_space<vmem>>, vector<1x128xf32>
    %74 = vector.broadcast %73 : vector<1x128xf32> to vector<16x128xf32>
    %75 = arith.addf %72, %74 : vector<16x128xf32>
    %c0_29 = arith.constant 0 : index
    %c0_30 = arith.constant 0 : index
    %76 = vector.load %arg8[%c0_29, %c0_30] : memref<16x128xf32, #tpu.memory_space<vmem>>, vector<16x128xf32>
    tpu.vector_store %arg8[%c0_29, %c0_30], %75 {strides = array<i32>} : memref<16x128xf32, #tpu.memory_space<vmem>>, vector<16x128xf32>,
    return
  }
  func.func @transform_0(%arg0: i32) -> (i32, i32) {
    %c0_i32 = arith.constant 0 : i32
    %c0_i32_0 = arith.constant 0 : i32
    return %arg0, %c0_i32 : i32, i32
  }
  func.func @transform_1(%arg0: i32) -> (i32, i32) {
    %c0_i32 = arith.constant 0 : i32
    %c0_i32_0 = arith.constant 0 : i32
    %c0_i32_1 = arith.constant 0 : i32
    return %c0_i32, %c0_i32_0 : i32, i32
  }
  func.func @transform_2(%arg0: i32) -> (i32, i32) {
    %c0_i32 = arith.constant 0 : i32
    %c0_i32_0 = arith.constant 0 : i32
    %c0_i32_1 = arith.constant 0 : i32
    return %c0_i32, %c0_i32_0 : i32, i32
  }
  func.func @transform_3(%arg0: i32) -> (i32, i32) {
    %c0_i32 = arith.constant 0 : i32
    %c0_i32_0 = arith.constant 0 : i32
    %c0_i32_1 = arith.constant 0 : i32
    return %c0_i32, %c0_i32_0 : i32, i32
  }
  func.func @transform_4(%arg0: i32) -> (i32, i32) {
    %c0_i32 = arith.constant 0 : i32
    %c0_i32_0 = arith.constant 0 : i32
    %c0_i32_1 = arith.constant 0 : i32
    return %c0_i32, %c0_i32_0 : i32, i32
  }
  func.func @transform_5(%arg0: i32) -> (i32, i32) {
    %c0_i32 = arith.constant 0 : i32
    %c0_i32_0 = arith.constant 0 : i32
    %c0_i32_1 = arith.constant 0 : i32
    return %c0_i32, %c0_i32_0 : i32, i32
  }
  func.func @transform_6(%arg0: i32) -> (i32, i32) {
    %c0_i32 = arith.constant 0 : i32
    %c0_i32_0 = arith.constant 0 : i32
    %c0_i32_1 = arith.constant 0 : i32
    return %c0_i32, %c0_i32_0 : i32, i32
  }
  func.func @transform_7(%arg0: i32) -> (i32, i32) {
    %c0_i32 = arith.constant 0 : i32
    %c0_i32_0 = arith.constant 0 : i32
    return %arg0, %c0_i32 : i32, i32
  }
}

module attributes {stable_mosaic.version = 11 : i64} {
  func.func @dqn_mlp_kernel(%arg0: i32, %arg1: memref<16x16xbf16, #tpu.memory_space<vmem>>, %arg2: memref<16x128xbf16, #tpu.memory_space<vmem>>, %arg3: memref<3x128xf32, #tpu.memory_space<vmem>>, %arg4: memref<128x128xbf16, #tpu.memory_space<vmem>>, %arg5: memref<3x128xf32, #tpu.memory_space<vmem>>, %arg6: memref<128x128xbf16, #tpu.memory_space<vmem>>, %arg7: memref<1x128xf32, #tpu.memory_space<vmem>>, %arg8: memref<16x128xf32, #tpu.memory_space<vmem>>) attributes {dimension_semantics = [#tpu.dimension_semantics<parallel>], iteration_bounds = array<i64: 1>, scalar_prefetch = 0 : i64, scratch_operands = 0 : i64, tpu.core_type = #tpu.core_type<tc>, window_params = [{transform_indices = @transform_0, window_bounds = array<i64: 16, 16>}, {pipeline_mode = #tpu.pipeline_mode<synchronous>, transform_indices = @transform_1, window_bounds = array<i64: 16, 128>}, {pipeline_mode = #tpu.pipeline_mode<synchronous>, transform_indices = @transform_2, window_bounds = array<i64: 3, 128>}, {pipeline_mode = #tpu.pipeline_mode<synchronous>, transform_indices = @transform_3, window_bounds = array<i64: 128, 128>}, {pipeline_mode = #tpu.pipeline_mode<synchronous>, transform_indices = @transform_4, window_bounds = array<i64: 3, 128>}, {pipeline_mode = #tpu.pipeline_mode<synchronous>, transform_indices = @transform_5, window_bounds = array<i64: 128, 128>}, {pipeline_mode = #tpu.pipeline_mode<synchronous>, transform_indices = @transform_6, window_bounds = array<i64: 1, 128>}, {transform_indices = @transform_7, window_bounds = array<i64: 16, 128>}]} {
    %c0 = arith.constant 0 : index
    %c0_0 = arith.constant 0 : index
    %0 = vector.load %arg1[%c0, %c0_0] : memref<16x16xbf16, #tpu.memory_space<vmem>>, vector<16x16xbf16>
    %c0_1 = arith.constant 0 : index
    %c0_2 = arith.constant 0 : index
    %1 = vector.load %arg3[%c0_1, %c0_2] : memref<3x128xf32, #tpu.memory_space<vmem>>, vector<3x128xf32>
    %c0_3 = arith.constant 0 : index
    %c0_4 = arith.constant 0 : index
    %2 = vector.load %arg5[%c0_3, %c0_4] : memref<3x128xf32, #tpu.memory_space<vmem>>, vector<3x128xf32>
    %c0_5 = arith.constant 0 : index
    %c0_6 = arith.constant 0 : index
    %3 = vector.load %arg2[%c0_5, %c0_6] : memref<16x128xbf16, #tpu.memory_space<vmem>>, vector<16x128xbf16>
    %cst = arith.constant dense<0.000000e+00> : vector<16x128xf32>
    %4 = tpu.matmul %0, %3, %cst {dimension_numbers = #tpu.dot_dimension_numbers<[1], [0], [0], [1], [0, 0, 1, 1], [], []>} : vector<16x16xbf16>, vector<16x128xbf16>, vector<16x128xf32> -> vector<16x128xf32>
    %5 = vector.extract_strided_slice %1 {offsets = [0, 0], sizes = [1, 128], strides = [1, 1]} : vector<3x128xf32> to vector<1x128xf32>
    %6 = vector.broadcast %5 : vector<1x128xf32> to vector<16x128xf32>
    %7 = arith.addf %4, %6 : vector<16x128xf32>
    %8 = vector.extract_strided_slice %1 {offsets = [1, 0], sizes = [1, 128], strides = [1, 1]} : vector<3x128xf32> to vector<1x128xf32>
    %9 = vector.extract_strided_slice %1 {offsets = [2, 0], sizes = [1, 128], strides = [1, 1]} : vector<3x128xf32> to vector<1x128xf32>
    %cst_7 = arith.constant dense<0.000000e+00> : vector<16xf32>
    %10 = vector.multi_reduction <add>, %7, %cst_7 [1] : vector<16x128xf32> to vector<16xf32>
    %11 = vector.shape_cast %10 : vector<16xf32> to vector<16x1xf32>
    %12 = arith.mulf %7, %7 : vector<16x128xf32>
    %cst_8 = arith.constant dense<0.000000e+00> : vector<16xf32>
    %13 = vector.multi_reduction <add>, %12, %cst_8 [1] : vector<16x128xf32> to vector<16xf32>
    %14 = vector.shape_cast %13 : vector<16xf32> to vector<16x1xf32>
    %cst_9 = arith.constant 3.125000e-02 : f32
    %15 = vector.broadcast %cst_9 : f32 to vector<16x1xf32>
    %16 = arith.mulf %11, %15 : vector<16x1xf32>
    %cst_10 = arith.constant 3.125000e-02 : f32
    %17 = vector.broadcast %cst_10 : f32 to vector<16x1xf32>
    %18 = arith.mulf %14, %17 : vector<16x1xf32>
    %19 = arith.mulf %16, %16 : vector<16x1xf32>
    %20 = arith.subf %18, %19 : vector<16x1xf32>
    %cst_11 = arith.constant 0.000000e+00 : f32
    %21 = vector.broadcast %cst_11 : f32 to vector<16x1xf32>
    %22 = arith.maximumf %20, %21 : vector<16x1xf32>
    %cst_12 = arith.constant 9.99999974E-6 : f32
    %23 = vector.broadcast %cst_12 : f32 to vector<16x1xf32>
    %24 = arith.addf %22, %23 : vector<16x1xf32>
    %25 = math.rsqrt %24 : vector<16x1xf32>
    %26 = vector.broadcast %16 : vector<16x1xf32> to vector<16x128xf32>
    %27 = arith.subf %7, %26 : vector<16x128xf32>
    %28 = vector.broadcast %25 : vector<16x1xf32> to vector<16x128xf32>
    %29 = arith.mulf %27, %28 : vector<16x128xf32>
    %30 = vector.broadcast %8 : vector<1x128xf32> to vector<16x128xf32>
    %31 = arith.mulf %29, %30 : vector<16x128xf32>
    %32 = vector.broadcast %9 : vector<1x128xf32> to vector<16x128xf32>
    %33 = arith.addf %31, %32 : vector<16x128xf32>
    %cst_13 = arith.constant 0.000000e+00 : f32
    %34 = vector.broadcast %cst_13 : f32 to vector<16x128xf32>
    %35 = arith.maximumf %33, %34 : vector<16x128xf32>
    %36 = arith.truncf %35 : vector<16x128xf32> to vector<16x128xbf16>
    %c0_14 = arith.constant 0 : index
    %c0_15 = arith.constant 0 : index
    %37 = vector.load %arg4[%c0_14, %c0_15] : memref<128x128xbf16, #tpu.memory_space<vmem>>, vector<128x128xbf16>
    %cst_16 = arith.constant dense<0.000000e+00> : vector<16x128xf32>
    %38 = tpu.matmul %36, %37, %cst_16 {dimension_numbers = #tpu.dot_dimension_numbers<[1], [0], [0], [1], [0, 0, 1, 1], [], []>} : vector<16x128xbf16>, vector<128x128xbf16>, vector<16x128xf32> -> vector<16x128xf32>
    %39 = vector.extract_strided_slice %2 {offsets = [0, 0], sizes = [1, 128], strides = [1, 1]} : vector<3x128xf32> to vector<1x128xf32>
    %40 = vector.broadcast %39 : vector<1x128xf32> to vector<16x128xf32>
    %41 = arith.addf %38, %40 : vector<16x128xf32>
    %42 = vector.extract_strided_slice %2 {offsets = [1, 0], sizes = [1, 128], strides = [1, 1]} : vector<3x128xf32> to vector<1x128xf32>
    %43 = vector.extract_strided_slice %2 {offsets = [2, 0], sizes = [1, 128], strides = [1, 1]} : vector<3x128xf32> to vector<1x128xf32>
    %cst_17 = arith.constant dense<0.000000e+00> : vector<16xf32>
    %44 = vector.multi_reduction <add>, %41, %cst_17 [1] : vector<16x128xf32> to vector<16xf32>
    %45 = vector.shape_cast %44 : vector<16xf32> to vector<16x1xf32>
    %46 = arith.mulf %41, %41 : vector<16x128xf32>
    %cst_18 = arith.constant dense<0.000000e+00> : vector<16xf32>
    %47 = vector.multi_reduction <add>, %46, %cst_18 [1] : vector<16x128xf32> to vector<16xf32>
    %48 = vector.shape_cast %47 : vector<16xf32> to vector<16x1xf32>
    %cst_19 = arith.constant 3.125000e-02 : f32
    %49 = vector.broadcast %cst_19 : f32 to vector<16x1xf32>
    %50 = arith.mulf %45, %49 : vector<16x1xf32>
    %cst_20 = arith.constant 3.125000e-02 : f32
    %51 = vector.broadcast %cst_20 : f32 to vector<16x1xf32>
    %52 = arith.mulf %48, %51 : vector<16x1xf32>
    %53 = arith.mulf %50, %50 : vector<16x1xf32>
    %54 = arith.subf %52, %53 : vector<16x1xf32>
    %cst_21 = arith.constant 0.000000e+00 : f32
    %55 = vector.broadcast %cst_21 : f32 to vector<16x1xf32>
    %56 = arith.maximumf %54, %55 : vector<16x1xf32>
    %cst_22 = arith.constant 9.99999974E-6 : f32
    %57 = vector.broadcast %cst_22 : f32 to vector<16x1xf32>
    %58 = arith.addf %56, %57 : vector<16x1xf32>
    %59 = math.rsqrt %58 : vector<16x1xf32>
    %60 = vector.broadcast %50 : vector<16x1xf32> to vector<16x128xf32>
    %61 = arith.subf %41, %60 : vector<16x128xf32>
    %62 = vector.broadcast %59 : vector<16x1xf32> to vector<16x128xf32>
    %63 = arith.mulf %61, %62 : vector<16x128xf32>
    %64 = vector.broadcast %42 : vector<1x128xf32> to vector<16x128xf32>
    %65 = arith.mulf %63, %64 : vector<16x128xf32>
    %66 = vector.broadcast %43 : vector<1x128xf32> to vector<16x128xf32>
    %67 = arith.addf %65, %66 : vector<16x128xf32>
    %cst_23 = arith.constant 0.000000e+00 : f32
    %68 = vector.broadcast %cst_23 : f32 to vector<16x128xf32>
    %69 = arith.maximumf %67, %68 : vector<16x128xf32>
    %70 = arith.truncf %69 : vector<16x128xf32> to vector<16x128xbf16>
    %c0_24 = arith.constant 0 : index
    %c0_25 = arith.constant 0 : index
    %71 = vector.load %arg6[%c0_24, %c0_25] : memref<128x128xbf16, #tpu.memory_space<vmem>>, vector<128x128xbf16>
    %cst_26 = arith.constant dense<0.000000e+00> : vector<16x128xf32>
    %72 = tpu.matmul %70, %71, %cst_26 {dimension_numbers = #tpu.dot_dimension_numbers<[1], [0], [0], [1], [0, 0, 1, 1], [], []>} : vector<16x128xbf16>, vector<128x128xbf16>, vector<16x128xf32> -> vector<16x128xf32>
    %c0_27 = arith.constant 0 : index
    %c0_28 = arith.constant 0 : index
    %73 = vector.load %arg7[%c0_27, %c0_28] : memref<1x128xf32, #tpu.memory_space<vmem>>, vector<1x128xf32>
    %74 = vector.broadcast %73 : vector<1x128xf32> to vector<16x128xf32>
    %75 = arith.addf %72, %74 : vector<16x128xf32>
    %c0_29 = arith.constant 0 : index
    %c0_30 = arith.constant 0 : index
    %76 = vector.load %arg8[%c0_29, %c0_30] : memref<16x128xf32, #tpu.memory_space<vmem>>, vector<16x128xf32>
    tpu.vector_store %arg8[%c0_29, %c0_30], %75 {strides = array<i32>} : memref<16x128xf32, #tpu.memory_space<vmem>>, vector<16x128xf32>,
    return
  }
  func.func @transform_0(%arg0: i32) -> (i32, i32) {
    %c0_i32 = arith.constant 0 : i32
    %c0_i32_0 = arith.constant 0 : i32
    return %arg0, %c0_i32 : i32, i32
  }
  func.func @transform_1(%arg0: i32) -> (i32, i32) {
    %c0_i32 = arith.constant 0 : i32
    %c0_i32_0 = arith.constant 0 : i32
    %c0_i32_1 = arith.constant 0 : i32
    return %c0_i32, %c0_i32_0 : i32, i32
  }
  func.func @transform_2(%arg0: i32) -> (i32, i32) {
    %c0_i32 = arith.constant 0 : i32
    %c0_i32_0 = arith.constant 0 : i32
    %c0_i32_1 = arith.constant 0 : i32
    return %c0_i32, %c0_i32_0 : i32, i32
  }
  func.func @transform_3(%arg0: i32) -> (i32, i32) {
    %c0_i32 = arith.constant 0 : i32
    %c0_i32_0 = arith.constant 0 : i32
    %c0_i32_1 = arith.constant 0 : i32
    return %c0_i32, %c0_i32_0 : i32, i32
  }
  func.func @transform_4(%arg0: i32) -> (i32, i32) {
    %c0_i32 = arith.constant 0 : i32
    %c0_i32_0 = arith.constant 0 : i32
    %c0_i32_1 = arith.constant 0 : i32
    return %c0_i32, %c0_i32_0 : i32, i32
  }
  func.func @transform_5(%arg0: i32) -> (i32, i32) {
    %c0_i32 = arith.constant 0 : i32
    %c0_i32_0 = arith.constant 0 : i32
    %c0_i32_1 = arith.constant 0 : i32
    return %c0_i32, %c0_i32_0 : i32, i32
  }
  func.func @transform_6(%arg0: i32) -> (i32, i32) {
    %c0_i32 = arith.constant 0 : i32
    %c0_i32_0 = arith.constant 0 : i32
    %c0_i32_1 = arith.constant 0 : i32
    return %c0_i32, %c0_i32_0 : i32, i32
  }
  func.func @transform_7(%arg0: i32) -> (i32, i32) {
    %c0_i32 = arith.constant 0 : i32
    %c0_i32_0 = arith.constant 0 : i32
    return %arg0, %c0_i32 : i32, i32
  }
}

</mosaic_0001>

<llo_original>
// kernel: tpu_custom_call.1
$region0: #{tpu_custom_call.1}
  #allocation0 [shape = 'u32[]', space=smem, size = 0x4, offset = 0x4, fixed_abs, tag = 'smem constant byte address 0x4 - core index']
  #allocation1 [shape = 'u32[144,128]{1,0:T(1,128)}', space=vmem, size = 0x12000, scoped, tag = 'internal scratch']
  %s0 = inlined_call_operand.hbm [shape: bf16[16,16], index: 0, kind: input, shape index: {}]
  %s1 = inlined_call_operand.hbm [shape: bf16[16,128], index: 1, kind: input, shape index: {}]
  %s2 = inlined_call_operand.vmem [shape: f32[3,128], index: 2, kind: input, shape index: {}]
  %s3 = inlined_call_operand.hbm [shape: bf16[128,128], index: 3, kind: input, shape index: {}]
  %s4 = inlined_call_operand.vmem [shape: f32[3,128], index: 4, kind: input, shape index: {}]
  %s5 = inlined_call_operand.hbm [shape: bf16[128,128], index: 5, kind: input, shape index: {}]
  %s6 = inlined_call_operand.vmem [shape: f32[1,128], index: 6, kind: input, shape index: {}]
  %s7 = inlined_call_operand.hbm [shape: f32[16,128], index: 7, kind: output, shape index: {}]
  %s8 = sld [smem:[#allocation0]]
  $region54: #{tpu_custom_call.1} parent=0
    _
  %s10 = ssub.s32 1, %s8
  %s11 = scalar_select 0, %s10, %s8
  $region1: #{tpu_custom_call.1} parent=0
    #allocation2 [shape = 'u8[4096]{0}', space=vmem, size = 0x1000, scoped, tag = 'input window, operand 0, single buffered']
    #allocation3 [shape = 's32[1]{0}', space=sflag, size = 0x4, scoped, tag = 'scoped memory for tpu_custom_call.1']
    #allocation4 [shape = 's32[1]{0}', space=sflag, size = 0x4, scoped, tag = 'scoped memory for tpu_custom_call.1']
    #allocation5 [shape = 'u8[4096]{0}', space=vmem, size = 0x1000, scoped, tag = 'input window, operand 1, single buffered']
    #allocation6 [shape = 's32[1]{0}', space=sflag, size = 0x4, scoped, tag = 'scoped memory for tpu_custom_call.1']
    #allocation7 [shape = 'u8[32768]{0}', space=vmem, size = 0x8000, scoped, tag = 'input window, operand 3, single buffered']
    #allocation8 [shape = 'u8[32768]{0}', space=vmem, size = 0x8000, scoped, tag = 'input window, operand 5, single buffered']
    #allocation9 [shape = 's32[1]{0}', space=sflag, size = 0x4, scoped, tag = 'scoped memory for tpu_custom_call.1']
    #allocation10 [shape = 'u8[8192]{0}', space=vmem, size = 0x2000, scoped, tag = 'output window, operand 0, single buffered']
    %12 = vsyncpa [#allocation3], 0
    %13 = vsyncpa [#allocation6], 0
    %14 = vsyncpa [#allocation9], 0
    %15 = vsyncpa [#allocation4], 0
    // Predicated region
    $region2: #{tpu_custom_call.1} parent=1 // pred_check
      _
    $region3: #{tpu_custom_call.1} parent=1 // pred_check_branch
      %17 = sbr.rel (0) target = $region5
    $region4: #{tpu_custom_call.1} parent=1 // pred_region
      %s19 = ssub.s32 128, 128
      %20 = vsyncadd [#allocation3], %s19
      %s21 = sshll.u32 [#allocation2], 4
      %s22 = int_to_ptr.vmem [resolvable:$true] %s21
      %27 = dma.hbm_to_vmem [thread:$0]  %s0, 128, %s22, [#allocation3], 64, 64, 4
    $region5: #{tpu_custom_call.1} parent=1 // pred_fallthru
      _
    // Predicated region
    $region6: #{tpu_custom_call.1} parent=1 // pred_check
      _
    $region7: #{tpu_custom_call.1} parent=1 // pred_check_branch
      %29 = sbr.rel (0) target = $region9
    $region8: #{tpu_custom_call.1} parent=1 // pred_region
      %s31 = ssub.s32 128, 128
      %32 = vsyncadd [#allocation6], %s31
      %s33 = sshll.u32 [#allocation5], 4
      %s34 = int_to_ptr.vmem [resolvable:$true] %s33
      %39 = dma.hbm_to_vmem [thread:$0]  %s1, 128, %s34, [#allocation6], 64, 64, 4
    $region9: #{tpu_custom_call.1} parent=1 // pred_fallthru
      _
    // Predicated region
    $region10: #{tpu_custom_call.1} parent=1 // pred_check
      _
    $region11: #{tpu_custom_call.1} parent=1 // pred_check_branch
      %41 = sbr.rel (0) target = $region13
    $region12: #{tpu_custom_call.1} parent=1 // pred_region
      _
    $region13: #{tpu_custom_call.1} parent=1 // pred_fallthru
      _
    // Predicated region
    $region14: #{tpu_custom_call.1} parent=1 // pred_check
      _
    $region15: #{tpu_custom_call.1} parent=1 // pred_check_branch
      %43 = sbr.rel (0) target = $region17
    $region16: #{tpu_custom_call.1} parent=1 // pred_region
      %s45 = ssub.s32 1024, 1024
      %46 = vsyncadd [#allocation6], %s45
      %s47 = sshll.u32 [#allocation7], 4
      %s48 = int_to_ptr.vmem [resolvable:$true] %s47
      %53 = dma.hbm_to_vmem [thread:$0]  %s3, 1024, %s48, [#allocation6], 64, 64, 4
    $region17: #{tpu_custom_call.1} parent=1 // pred_fallthru
      _
    // Predicated region
    $region18: #{tpu_custom_call.1} parent=1 // pred_check
      _
    $region19: #{tpu_custom_call.1} parent=1 // pred_check_branch
      %55 = sbr.rel (0) target = $region21
    $region20: #{tpu_custom_call.1} parent=1 // pred_region
      _
    $region21: #{tpu_custom_call.1} parent=1 // pred_fallthru
      _
    // Predicated region
    $region22: #{tpu_custom_call.1} parent=1 // pred_check
      _
    $region23: #{tpu_custom_call.1} parent=1 // pred_check_branch
      %57 = sbr.rel (0) target = $region25
    $region24: #{tpu_custom_call.1} parent=1 // pred_region
      %s59 = ssub.s32 1024, 1024
      %60 = vsyncadd [#allocation9], %s59
      %s61 = sshll.u32 [#allocation8], 4
      %s62 = int_to_ptr.vmem [resolvable:$true] %s61
      %67 = dma.hbm_to_vmem [thread:$0]  %s5, 1024, %s62, [#allocation9], 64, 64, 4
    $region25: #{tpu_custom_call.1} parent=1 // pred_fallthru
      _
    // Predicated region
    $region26: #{tpu_custom_call.1} parent=1 // pred_check
      _
    $region27: #{tpu_custom_call.1} parent=1 // pred_check_branch
      %69 = sbr.rel (0) target = $region29
    $region28: #{tpu_custom_call.1} parent=1 // pred_region
      _
    $region29: #{tpu_custom_call.1} parent=1 // pred_fallthru
      _
    // Predicated region
    $region30: #{tpu_custom_call.1} parent=1 // pred_check
      _
    $region31: #{tpu_custom_call.1} parent=1 // pred_check_branch
      %71 = sbr.rel (0) target = $region33
    $region32: #{tpu_custom_call.1} parent=1 // pred_region
      %72 = dma.done [#allocation3], 128
    $region33: #{tpu_custom_call.1} parent=1 // pred_fallthru
      _
    // Predicated region
    $region34: #{tpu_custom_call.1} parent=1 // pred_check
      _
    $region35: #{tpu_custom_call.1} parent=1 // pred_check_branch
      %74 = sbr.rel (0) target = $region37
    $region36: #{tpu_custom_call.1} parent=1 // pred_region
      %75 = dma.done [#allocation6], 128
    $region37: #{tpu_custom_call.1} parent=1 // pred_fallthru
      _
    // Predicated region
    $region38: #{tpu_custom_call.1} parent=1 // pred_check
      _
    $region39: #{tpu_custom_call.1} parent=1 // pred_check_branch
      %77 = sbr.rel (0) target = $region41
    $region40: #{tpu_custom_call.1} parent=1 // pred_region
      %78 = dma.done [#allocation6], 1024
    $region41: #{tpu_custom_call.1} parent=1 // pred_fallthru
      _
    // Predicated region
    $region42: #{tpu_custom_call.1} parent=1 // pred_check
      _
    $region43: #{tpu_custom_call.1} parent=1 // pred_check_branch
      %80 = sbr.rel (0) target = $region45
    $region44: #{tpu_custom_call.1} parent=1 // pred_region
      %81 = dma.done [#allocation9], 1024
    $region45: #{tpu_custom_call.1} parent=1 // pred_fallthru
      _
    %v83 = vld [vmem:[#allocation2] sm:$0xf]
    %v84 = vld [vmem:[#allocation2 + $0x4] sm:$0xf]
    %v85 = vld [vmem:[%s2] sm:$0x7]
    %v86 = vld [vmem:[%s4] sm:$0x7]
    %v87 = vld [vmem:[#allocation5] sm:$0xf]
    %v88 = vld [vmem:[#allocation5 + $0x4] sm:$0xf]
    %v89 = vlaneseq
    %v90 = vshrl.u32 %v89, 7
    %v91 = vsub.s32 0, %v90
    %v92 = vrot.slane %v85, %v91
    %v95 = vunpack.c.l.b16 %v83
    %v96 = vunpack.c.l.b16 %v84
    %v97 = vpack.c.b16 %v96, %v95
    %v100 = vunpack.c.l.b16 %v87
    %v101 = vunpack.c.l.b16 %v88
    %v102 = vpack.c.b16 %v101, %v100
    %vm104 = vcmask 130048
    %v106 = vsel %vm104, %v97, 0
    %108 = vmatprep.subr.bf16.mxu0 0
    %109 = vmatpush1.bf16.msra.mxu0 %v102
    %110 = vmatprep.subr.bf16.mxu0 0
    %111 = vmatpush1.bf16.msra.mxu0 0
    %112 = vmatprep.subr.bf16.mxu0 0
    %113 = vmatpush1.bf16.msra.mxu0 0
    %114 = vmatprep.subr.bf16.mxu0 0
    %115 = vmatpush1.bf16.msra.mxu0 0
    %116 = vmatprep.subr.bf16.mxu0 0
    %117 = vmatpush1.bf16.msra.mxu0 0
    %118 = vmatprep.subr.bf16.mxu0 0
    %119 = vmatpush1.bf16.msra.mxu0 0
    %120 = vmatprep.subr.bf16.mxu0 0
    %121 = vmatpush1.bf16.msra.mxu0 0
    %122 = vmatprep.subr.bf16.mxu0 0
    %123 = vmatpush1.bf16.msra.mxu0 0
    %124 = vmatprep.subr.bf16.mxu0 0
    %125 = vmatpush1.bf16.msra.mxu0 0
    %126 = vmatprep.subr.bf16.mxu0 0
    %127 = vmatpush1.bf16.msra.mxu0 0
    %128 = vmatprep.subr.bf16.mxu0 0
    %129 = vmatpush1.bf16.msra.mxu0 0
    %130 = vmatprep.subr.bf16.mxu0 0
    %131 = vmatpush1.bf16.msra.mxu0 0
    %132 = vmatprep.subr.bf16.mxu0 0
    %133 = vmatpush1.bf16.msra.mxu0 0
    %134 = vmatprep.subr.bf16.mxu0 0
    %135 = vmatpush1.bf16.msra.mxu0 0
    %136 = vmatprep.subr.bf16.mxu0 0
    %137 = vmatpush1.bf16.msra.mxu0 0
    %138 = vmatprep.subr.bf16.mxu0 0
    %139 = vmatpush1.bf16.msra.mxu0 0
    %140 = vmatprep.mubr.bf16.mxu0 0
    %141 = vmatmul.mubr.bf16.gmra.mrb[0].mxu0 %v106
    %v142 = vpop.f32.mrb[0].mxu0
    %v143 = vadd.f32 %v92, %v142
    %v144 = vpop.f32.mrb[0].mxu0
    %v145 = vpop.f32.mrb[0].mxu0
    %v146 = vadd.f32 %v92, %v145
    %v147 = vpop.f32.mrb[0].mxu0
    %148 = vdwg.mxu0
    %149 = vadd.xlane.f32.xlu0 %v143
    %v150 = vpop.xlane.xlu0 %149
    %151 = vadd.xlane.f32.xlu0 %v146
    %v152 = vpop.xlane.xlu0 %151
    %v153 = vmul.f32 %v143, %v143
    %v154 = vmul.f32 %v146, %v146
    %155 = vadd.xlane.f32.xlu0 %v153
    %v156 = vpop.xlane.xlu0 %155
    %157 = vadd.xlane.f32.xlu0 %v154
    %v158 = vpop.xlane.xlu0 %157
    %v159 = vmul.f32 %v150, 0.03125
    %v160 = vmul.f32 %v152, 0.03125
    %v161 = vmul.f32 %v156, 0.03125
    %v162 = vmul.f32 %v158, 0.03125
    %v163 = vmul.f32 %v159, %v159
    %v164 = vmul.f32 %v160, %v160
    %v165 = vsub.f32 %v161, %v163
    %v166 = vsub.f32 %v162, %v164
    %v167 = vmax.f32 %v165, 0.0
    %v168 = vmax.f32 %v166, 0.0
    %v169 = vadd.f32 %v167, 1e-05
    %v170 = vadd.f32 %v168, 1e-05
    %v171 = vrsqrt.pop %v169
    %v172 = vrsqrt.pop %v170
    %v173 = vsub.f32 %v143, %v159
    %v174 = vsub.f32 %v146, %v160
    %v175 = vmul.f32 %v173, %v171
    %v176 = vmul.f32 %v174, %v172
    %v177 = vlaneseq
    %v178 = vshrl.u32 %v177, 7
    %v179 = vsub.s32 1, %v178
    %v180 = vrot.slane %v85, %v179
    %v181 = vmul.f32 %v175, %v180
    %v182 = vmul.f32 %v176, %v180
    %v183 = vlaneseq
    %v184 = vshrl.u32 %v183, 7
    %v185 = vsub.s32 2, %v184
    %v186 = vrot.slane %v85, %v185
    %v187 = vadd.f32 %v181, %v186
    %v188 = vadd.f32 %v182, %v186
    %v189 = vmax.f32 %v187, 0.0
    %v190 = vmax.f32 %v188, 0.0
    %v191 = vpack.c.bf16 %v190, %v189
    %v192 = vld [vmem:[#allocation7] sm:$0xf]
    %v193 = vld [vmem:[#allocation7 + $0x4] sm:$0xf]
    %v194 = vld [vmem:[#allocation7 + $0x8] sm:$0xf]
    %v195 = vld [vmem:[#allocation7 + $0xc] sm:$0xf]
    %v196 = vld [vmem:[#allocation7 + $0x10] sm:$0xf]
    %v197 = vld [vmem:[#allocation7 + $0x14] sm:$0xf]
    %v198 = vld [vmem:[#allocation7 + $0x18] sm:$0xf]
    %v199 = vld [vmem:[#allocation7 + $0x1c] sm:$0xf]
    %v200 = vld [vmem:[#allocation7 + $0x20] sm:$0xf]
    %v201 = vld [vmem:[#allocation7 + $0x24] sm:$0xf]
    %v202 = vld [vmem:[#allocation7 + $0x28] sm:$0xf]
    %v203 = vld [vmem:[#allocation7 + $0x2c] sm:$0xf]
    %v204 = vld [vmem:[#allocation7 + $0x30] sm:$0xf]
    %v205 = vld [vmem:[#allocation7 + $0x34] sm:$0xf]
    %v206 = vld [vmem:[#allocation7 + $0x38] sm:$0xf]
    %v207 = vld [vmem:[#allocation7 + $0x3c] sm:$0xf]
    %v208 = vlaneseq
    %v209 = vshrl.u32 %v208, 7
    %v210 = vsub.s32 0, %v209
    %v211 = vrot.slane %v86, %v210
    %v228 = vunpack.c.l.b16 %v192
    %v229 = vunpack.c.l.b16 %v193
    %v230 = vunpack.c.l.b16 %v194
    %v231 = vunpack.c.l.b16 %v195
    %v232 = vunpack.c.l.b16 %v196
    %v233 = vunpack.c.l.b16 %v197
    %v234 = vunpack.c.l.b16 %v198
    %v235 = vunpack.c.l.b16 %v199
    %v236 = vunpack.c.l.b16 %v200
    %v237 = vunpack.c.l.b16 %v201
    %v238 = vunpack.c.l.b16 %v202
    %v239 = vunpack.c.l.b16 %v203
    %v240 = vunpack.c.l.b16 %v204
    %v241 = vunpack.c.l.b16 %v205
    %v242 = vunpack.c.l.b16 %v206
    %v243 = vunpack.c.l.b16 %v207
    %v244 = vpack.c.b16 %v229, %v228
    %v245 = vpack.c.b16 %v231, %v230
    %v246 = vpack.c.b16 %v233, %v232
    %v247 = vpack.c.b16 %v235, %v234
    %v248 = vpack.c.b16 %v237, %v236
    %v249 = vpack.c.b16 %v239, %v238
    %v250 = vpack.c.b16 %v241, %v240
    %v251 = vpack.c.b16 %v243, %v242
    %260 = vmatprep.subr.bf16.mxu0 0
    %261 = vmatpush1.bf16.msra.mxu0 %v244
    %262 = vmatprep.subr.bf16.mxu0 0
    %263 = vmatpush1.bf16.msra.mxu0 %v245
    %264 = vmatprep.subr.bf16.mxu0 0
    %265 = vmatpush1.bf16.msra.mxu0 %v246
    %266 = vmatprep.subr.bf16.mxu0 0
    %267 = vmatpush1.bf16.msra.mxu0 %v247
    %268 = vmatprep.subr.bf16.mxu0 0
    %269 = vmatpush1.bf16.msra.mxu0 %v248
    %270 = vmatprep.subr.bf16.mxu0 0
    %271 = vmatpush1.bf16.msra.mxu0 %v249
    %272 = vmatprep.subr.bf16.mxu0 0
    %273 = vmatpush1.bf16.msra.mxu0 %v250
    %274 = vmatprep.subr.bf16.mxu0 0
    %275 = vmatpush1.bf16.msra.mxu0 %v251
    %276 = vmatprep.subr.bf16.mxu0 0
    %277 = vmatpush1.bf16.msra.mxu0 0
    %278 = vmatprep.subr.bf16.mxu0 0
    %279 = vmatpush1.bf16.msra.mxu0 0
    %280 = vmatprep.subr.bf16.mxu0 0
    %281 = vmatpush1.bf16.msra.mxu0 0
    %282 = vmatprep.subr.bf16.mxu0 0
    %283 = vmatpush1.bf16.msra.mxu0 0
    %284 = vmatprep.subr.bf16.mxu0 0
    %285 = vmatpush1.bf16.msra.mxu0 0
    %286 = vmatprep.subr.bf16.mxu0 0
    %287 = vmatpush1.bf16.msra.mxu0 0
    %288 = vmatprep.subr.bf16.mxu0 0
    %289 = vmatpush1.bf16.msra.mxu0 0
    %290 = vmatprep.subr.bf16.mxu0 0
    %291 = vmatpush1.bf16.msra.mxu0 0
    %292 = vmatprep.mubr.bf16.mxu0 0
    %293 = vmatmul.mubr.bf16.gmra.mrb[0].mxu0 %v191
    %v294 = vpop.f32.mrb[0].mxu0
    %v295 = vadd.f32 %v211, %v294
    %v296 = vpop.f32.mrb[0].mxu0
    %v297 = vpop.f32.mrb[0].mxu0
    %v298 = vadd.f32 %v211, %v297
    %v299 = vpop.f32.mrb[0].mxu0
    %300 = vdwg.mxu0
    %301 = vadd.xlane.f32.xlu0 %v295
    %v302 = vpop.xlane.xlu0 %301
    %303 = vadd.xlane.f32.xlu0 %v298
    %v304 = vpop.xlane.xlu0 %303
    %v305 = vmul.f32 %v295, %v295
    %v306 = vmul.f32 %v298, %v298
    %307 = vadd.xlane.f32.xlu0 %v305
    %v308 = vpop.xlane.xlu0 %307
    %309 = vadd.xlane.f32.xlu0 %v306
    %v310 = vpop.xlane.xlu0 %309
    %v311 = vmul.f32 %v302, 0.03125
    %v312 = vmul.f32 %v304, 0.03125
    %v313 = vmul.f32 %v308, 0.03125
    %v314 = vmul.f32 %v310, 0.03125
    %v315 = vmul.f32 %v311, %v311
    %v316 = vmul.f32 %v312, %v312
    %v317 = vsub.f32 %v313, %v315
    %v318 = vsub.f32 %v314, %v316
    %v319 = vmax.f32 %v317, 0.0
    %v320 = vmax.f32 %v318, 0.0
    %v321 = vadd.f32 %v319, 1e-05
    %v322 = vadd.f32 %v320, 1e-05
    %v323 = vrsqrt.pop %v321
    %v324 = vrsqrt.pop %v322
    %v325 = vsub.f32 %v295, %v311
    %v326 = vsub.f32 %v298, %v312
    %v327 = vmul.f32 %v325, %v323
    %v328 = vmul.f32 %v326, %v324
    %v329 = vlaneseq
    %v330 = vshrl.u32 %v329, 7
    %v331 = vsub.s32 1, %v330
    %v332 = vrot.slane %v86, %v331
    %v333 = vmul.f32 %v327, %v332
    %v334 = vmul.f32 %v328, %v332
    %v335 = vlaneseq
    %v336 = vshrl.u32 %v335, 7
    %v337 = vsub.s32 2, %v336
    %v338 = vrot.slane %v86, %v337
    %v339 = vadd.f32 %v333, %v338
    %v340 = vadd.f32 %v334, %v338
    %v341 = vmax.f32 %v339, 0.0
    %v342 = vmax.f32 %v340, 0.0
    %v343 = vpack.c.bf16 %v342, %v341
    %v344 = vld [vmem:[#allocation8] sm:$0xf]
    %v345 = vld [vmem:[#allocation8 + $0x4] sm:$0xf]
    %v346 = vld [vmem:[#allocation8 + $0x8] sm:$0xf]
    %v347 = vld [vmem:[#allocation8 + $0xc] sm:$0xf]
    %v348 = vld [vmem:[#allocation8 + $0x10] sm:$0xf]
    %v349 = vld [vmem:[#allocation8 + $0x14] sm:$0xf]
    %v350 = vld [vmem:[#allocation8 + $0x18] sm:$0xf]
    %v351 = vld [vmem:[#allocation8 + $0x1c] sm:$0xf]
    %v352 = vld [vmem:[#allocation8 + $0x20] sm:$0xf]
    %v353 = vld [vmem:[#allocation8 + $0x24] sm:$0xf]
    %v354 = vld [vmem:[#allocation8 + $0x28] sm:$0xf]
    %v355 = vld [vmem:[#allocation8 + $0x2c] sm:$0xf]
    %v356 = vld [vmem:[#allocation8 + $0x30] sm:$0xf]
    %v357 = vld [vmem:[#allocation8 + $0x34] sm:$0xf]
    %v358 = vld [vmem:[#allocation8 + $0x38] sm:$0xf]
    %v359 = vld [vmem:[#allocation8 + $0x3c] sm:$0xf]
    %v360 = vld [vmem:[%s6] sm:$0x1]
    %v362 = vlaneseq
    %v363 = vshrl.u32 %v362, 7
    %v364 = vsub.s32 0, %v363
    %v365 = vrot.slane %v360, %v364
    %v383 = vunpack.c.l.b16 %v344
    %v384 = vunpack.c.l.b16 %v345
    %v385 = vunpack.c.l.b16 %v346
    %v386 = vunpack.c.l.b16 %v347
    %v387 = vunpack.c.l.b16 %v348
    %v388 = vunpack.c.l.b16 %v349
    %v389 = vunpack.c.l.b16 %v350
    %v390 = vunpack.c.l.b16 %v351
    %v391 = vunpack.c.l.b16 %v352
    %v392 = vunpack.c.l.b16 %v353
    %v393 = vunpack.c.l.b16 %v354
    %v394 = vunpack.c.l.b16 %v355
    %v395 = vunpack.c.l.b16 %v356
    %v396 = vunpack.c.l.b16 %v357
    %v397 = vunpack.c.l.b16 %v358
    %v398 = vunpack.c.l.b16 %v359
    %v399 = vpack.c.b16 %v384, %v383
    %v400 = vpack.c.b16 %v386, %v385
    %v401 = vpack.c.b16 %v388, %v387
    %v402 = vpack.c.b16 %v390, %v389
    %v403 = vpack.c.b16 %v392, %v391
    %v404 = vpack.c.b16 %v394, %v393
    %v405 = vpack.c.b16 %v396, %v395
    %v406 = vpack.c.b16 %v398, %v397
    %415 = vmatprep.subr.bf16.mxu0 0
    %416 = vmatpush1.bf16.msra.mxu0 %v399
    %417 = vmatprep.subr.bf16.mxu0 0
    %418 = vmatpush1.bf16.msra.mxu0 %v400
    %419 = vmatprep.subr.bf16.mxu0 0
    %420 = vmatpush1.bf16.msra.mxu0 %v401
    %421 = vmatprep.subr.bf16.mxu0 0
    %422 = vmatpush1.bf16.msra.mxu0 %v402
    %423 = vmatprep.subr.bf16.mxu0 0
    %424 = vmatpush1.bf16.msra.mxu0 %v403
    %425 = vmatprep.subr.bf16.mxu0 0
    %426 = vmatpush1.bf16.msra.mxu0 %v404
    %427 = vmatprep.subr.bf16.mxu0 0
    %428 = vmatpush1.bf16.msra.mxu0 %v405
    %429 = vmatprep.subr.bf16.mxu0 0
    %430 = vmatpush1.bf16.msra.mxu0 %v406
    %431 = vmatprep.subr.bf16.mxu0 0
    %432 = vmatpush1.bf16.msra.mxu0 0
    %433 = vmatprep.subr.bf16.mxu0 0
    %434 = vmatpush1.bf16.msra.mxu0 0
    %435 = vmatprep.subr.bf16.mxu0 0
    %436 = vmatpush1.bf16.msra.mxu0 0
    %437 = vmatprep.subr.bf16.mxu0 0
    %438 = vmatpush1.bf16.msra.mxu0 0
    %439 = vmatprep.subr.bf16.mxu0 0
    %440 = vmatpush1.bf16.msra.mxu0 0
    %441 = vmatprep.subr.bf16.mxu0 0
    %442 = vmatpush1.bf16.msra.mxu0 0
    %443 = vmatprep.subr.bf16.mxu0 0
    %444 = vmatpush1.bf16.msra.mxu0 0
    %445 = vmatprep.subr.bf16.mxu0 0
    %446 = vmatpush1.bf16.msra.mxu0 0
    %447 = vmatprep.mubr.bf16.mxu0 0
    %448 = vmatmul.mubr.bf16.gmra.mrb[0].mxu0 %v343
    %v449 = vpop.f32.mrb[0].mxu0
    %v450 = vadd.f32 %v365, %v449
    %v451 = vpop.f32.mrb[0].mxu0
    %v452 = vpop.f32.mrb[0].mxu0
    %v453 = vadd.f32 %v365, %v452
    %v454 = vpop.f32.mrb[0].mxu0
    %455 = vdwg.mxu0
    %456 = vst [vmem:[#allocation10] sm:$0xff] %v450
    %457 = vst [vmem:[#allocation10 + $0x8] sm:$0xff] %v453
    // Predicated region
    $region46: #{tpu_custom_call.1} parent=1 // pred_check
      _
    $region47: #{tpu_custom_call.1} parent=1 // pred_check_branch
      %459 = sbr.rel (0) target = $region49
    $region48: #{tpu_custom_call.1} parent=1 // pred_region
      %s461 = ssub.s32 256, 256
      %462 = vsyncadd [#allocation4], %s461
      %s463 = sshll.u32 [#allocation10], 4
      %s464 = int_to_ptr.vmem [resolvable:$true] %s463
      %469 = dma.vmem_to_hbm [thread:$0]  %s464, 256, %s7, [#allocation4], 128, 128, 8
    $region49: #{tpu_custom_call.1} parent=1 // pred_fallthru
      _
    // Predicated region
    $region50: #{tpu_custom_call.1} parent=1 // pred_check
      _
    $region51: #{tpu_custom_call.1} parent=1 // pred_check_branch
      %471 = sbr.rel (0) target = $region53
    $region52: #{tpu_custom_call.1} parent=1 // pred_region
      %472 = dma.done [#allocation4], 256
    $region53: #{tpu_custom_call.1} parent=1 // pred_fallthru
      _
    %473 = vsyncpa [#allocation3], 1
    %474 = vsyncpa [#allocation6], 1
    %475 = vsyncpa [#allocation9], 1
    %476 = vsyncpa [#allocation4], 1

// kernel: tpu_custom_call.1
$region0: #{tpu_custom_call.1}
  #allocation0 [shape = 'u32[]', space=smem, size = 0x4, offset = 0x4, fixed_abs, tag = 'smem constant byte address 0x4 - core index']
  #allocation1 [shape = 'u32[144,128]{1,0:T(1,128)}', space=vmem, size = 0x12000, scoped, tag = 'internal scratch']
  %s0 = inlined_call_operand.hbm [shape: bf16[16,16], index: 0, kind: input, shape index: {}]
  %s1 = inlined_call_operand.hbm [shape: bf16[16,128], index: 1, kind: input, shape index: {}]
  %s2 = inlined_call_operand.vmem [shape: f32[3,128], index: 2, kind: input, shape index: {}]
  %s3 = inlined_call_operand.hbm [shape: bf16[128,128], index: 3, kind: input, shape index: {}]
  %s4 = inlined_call_operand.vmem [shape: f32[3,128], index: 4, kind: input, shape index: {}]
  %s5 = inlined_call_operand.hbm [shape: bf16[128,128], index: 5, kind: input, shape index: {}]
  %s6 = inlined_call_operand.vmem [shape: f32[1,128], index: 6, kind: input, shape index: {}]
  %s7 = inlined_call_operand.hbm [shape: f32[16,128], index: 7, kind: output, shape index: {}]
  %s8 = sld [smem:[#allocation0]]
  $region54: #{tpu_custom_call.1} parent=0
    _
  %s10 = ssub.s32 1, %s8
  %s11 = scalar_select 0, %s10, %s8
  $region1: #{tpu_custom_call.1} parent=0
    #allocation2 [shape = 'u8[4096]{0}', space=vmem, size = 0x1000, scoped, tag = 'input window, operand 0, single buffered']
    #allocation3 [shape = 's32[1]{0}', space=sflag, size = 0x4, scoped, tag = 'scoped memory for tpu_custom_call.1']
    #allocation4 [shape = 's32[1]{0}', space=sflag, size = 0x4, scoped, tag = 'scoped memory for tpu_custom_call.1']
    #allocation5 [shape = 'u8[4096]{0}', space=vmem, size = 0x1000, scoped, tag = 'input window, operand 1, single buffered']
    #allocation6 [shape = 's32[1]{0}', space=sflag, size = 0x4, scoped, tag = 'scoped memory for tpu_custom_call.1']
    #allocation7 [shape = 'u8[32768]{0}', space=vmem, size = 0x8000, scoped, tag = 'input window, operand 3, single buffered']
    #allocation8 [shape = 'u8[32768]{0}', space=vmem, size = 0x8000, scoped, tag = 'input window, operand 5, single buffered']
    #allocation9 [shape = 's32[1]{0}', space=sflag, size = 0x4, scoped, tag = 'scoped memory for tpu_custom_call.1']
    #allocation10 [shape = 'u8[8192]{0}', space=vmem, size = 0x2000, scoped, tag = 'output window, operand 0, single buffered']
    %12 = vsyncpa [#allocation3], 0
    %13 = vsyncpa [#allocation6], 0
    %14 = vsyncpa [#allocation9], 0
    %15 = vsyncpa [#allocation4], 0
    // Predicated region
    $region2: #{tpu_custom_call.1} parent=1 // pred_check
      _
    $region3: #{tpu_custom_call.1} parent=1 // pred_check_branch
      %17 = sbr.rel (0) target = $region5
    $region4: #{tpu_custom_call.1} parent=1 // pred_region
      %s19 = ssub.s32 128, 128
      %20 = vsyncadd [#allocation3], %s19
      %s21 = sshll.u32 [#allocation2], 4
      %s22 = int_to_ptr.vmem [resolvable:$true] %s21
      %27 = dma.hbm_to_vmem [thread:$0]  %s0, 128, %s22, [#allocation3], 64, 64, 4
    $region5: #{tpu_custom_call.1} parent=1 // pred_fallthru
      _
    // Predicated region
    $region6: #{tpu_custom_call.1} parent=1 // pred_check
      _
    $region7: #{tpu_custom_call.1} parent=1 // pred_check_branch
      %29 = sbr.rel (0) target = $region9
    $region8: #{tpu_custom_call.1} parent=1 // pred_region
      %s31 = ssub.s32 128, 128
      %32 = vsyncadd [#allocation6], %s31
      %s33 = sshll.u32 [#allocation5], 4
      %s34 = int_to_ptr.vmem [resolvable:$true] %s33
      %39 = dma.hbm_to_vmem [thread:$0]  %s1, 128, %s34, [#allocation6], 64, 64, 4
    $region9: #{tpu_custom_call.1} parent=1 // pred_fallthru
      _
    // Predicated region
    $region10: #{tpu_custom_call.1} parent=1 // pred_check
      _
    $region11: #{tpu_custom_call.1} parent=1 // pred_check_branch
      %41 = sbr.rel (0) target = $region13
    $region12: #{tpu_custom_call.1} parent=1 // pred_region
      _
    $region13: #{tpu_custom_call.1} parent=1 // pred_fallthru
      _
    // Predicated region
    $region14: #{tpu_custom_call.1} parent=1 // pred_check
      _
    $region15: #{tpu_custom_call.1} parent=1 // pred_check_branch
      %43 = sbr.rel (0) target = $region17
    $region16: #{tpu_custom_call.1} parent=1 // pred_region
      %s45 = ssub.s32 1024, 1024
      %46 = vsyncadd [#allocation6], %s45
      %s47 = sshll.u32 [#allocation7], 4
      %s48 = int_to_ptr.vmem [resolvable:$true] %s47
      %53 = dma.hbm_to_vmem [thread:$0]  %s3, 1024, %s48, [#allocation6], 64, 64, 4
    $region17: #{tpu_custom_call.1} parent=1 // pred_fallthru
      _
    // Predicated region
    $region18: #{tpu_custom_call.1} parent=1 // pred_check
      _
    $region19: #{tpu_custom_call.1} parent=1 // pred_check_branch
      %55 = sbr.rel (0) target = $region21
    $region20: #{tpu_custom_call.1} parent=1 // pred_region
      _
    $region21: #{tpu_custom_call.1} parent=1 // pred_fallthru
      _
    // Predicated region
    $region22: #{tpu_custom_call.1} parent=1 // pred_check
      _
    $region23: #{tpu_custom_call.1} parent=1 // pred_check_branch
      %57 = sbr.rel (0) target = $region25
    $region24: #{tpu_custom_call.1} parent=1 // pred_region
      %s59 = ssub.s32 1024, 1024
      %60 = vsyncadd [#allocation9], %s59
      %s61 = sshll.u32 [#allocation8], 4
      %s62 = int_to_ptr.vmem [resolvable:$true] %s61
      %67 = dma.hbm_to_vmem [thread:$0]  %s5, 1024, %s62, [#allocation9], 64, 64, 4
    $region25: #{tpu_custom_call.1} parent=1 // pred_fallthru
      _
    // Predicated region
    $region26: #{tpu_custom_call.1} parent=1 // pred_check
      _
    $region27: #{tpu_custom_call.1} parent=1 // pred_check_branch
      %69 = sbr.rel (0) target = $region29
    $region28: #{tpu_custom_call.1} parent=1 // pred_region
      _
    $region29: #{tpu_custom_call.1} parent=1 // pred_fallthru
      _
    // Predicated region
    $region30: #{tpu_custom_call.1} parent=1 // pred_check
      _
    $region31: #{tpu_custom_call.1} parent=1 // pred_check_branch
      %71 = sbr.rel (0) target = $region33
    $region32: #{tpu_custom_call.1} parent=1 // pred_region
      %72 = dma.done [#allocation3], 128
    $region33: #{tpu_custom_call.1} parent=1 // pred_fallthru
      _
    // Predicated region
    $region34: #{tpu_custom_call.1} parent=1 // pred_check
      _
    $region35: #{tpu_custom_call.1} parent=1 // pred_check_branch
      %74 = sbr.rel (0) target = $region37
    $region36: #{tpu_custom_call.1} parent=1 // pred_region
      %75 = dma.done [#allocation6], 128
    $region37: #{tpu_custom_call.1} parent=1 // pred_fallthru
      _
    // Predicated region
    $region38: #{tpu_custom_call.1} parent=1 // pred_check
      _
    $region39: #{tpu_custom_call.1} parent=1 // pred_check_branch
      %77 = sbr.rel (0) target = $region41
    $region40: #{tpu_custom_call.1} parent=1 // pred_region
      %78 = dma.done [#allocation6], 1024
    $region41: #{tpu_custom_call.1} parent=1 // pred_fallthru
      _
    // Predicated region
    $region42: #{tpu_custom_call.1} parent=1 // pred_check
      _
    $region43: #{tpu_custom_call.1} parent=1 // pred_check_branch
      %80 = sbr.rel (0) target = $region45
    $region44: #{tpu_custom_call.1} parent=1 // pred_region
      %81 = dma.done [#allocation9], 1024
    $region45: #{tpu_custom_call.1} parent=1 // pred_fallthru
      _
    %v83 = vld [vmem:[#allocation2] sm:$0xf]
    %v84 = vld [vmem:[#allocation2 + $0x4] sm:$0xf]
    %v85 = vld [vmem:[%s2] sm:$0x7]
    %v86 = vld [vmem:[%s4] sm:$0x7]
    %v87 = vld [vmem:[#allocation5] sm:$0xf]
    %v88 = vld [vmem:[#allocation5 + $0x4] sm:$0xf]
    %v89 = vlaneseq
    %v90 = vshrl.u32 %v89, 7
    %v91 = vsub.s32 0, %v90
    %v92 = vrot.slane %v85, %v91
    %v95 = vunpack.c.l.b16 %v83
    %v96 = vunpack.c.l.b16 %v84
    %v97 = vpack.c.b16 %v96, %v95
    %v100 = vunpack.c.l.b16 %v87
    %v101 = vunpack.c.l.b16 %v88
    %v102 = vpack.c.b16 %v101, %v100
    %vm104 = vcmask 130048
    %v106 = vsel %vm104, %v97, 0
    %108 = vmatprep.subr.bf16.mxu0 0
    %109 = vmatpush1.bf16.msra.mxu0 %v102
    %110 = vmatprep.subr.bf16.mxu0 0
    %111 = vmatpush1.bf16.msra.mxu0 0
    %112 = vmatprep.subr.bf16.mxu0 0
    %113 = vmatpush1.bf16.msra.mxu0 0
    %114 = vmatprep.subr.bf16.mxu0 0
    %115 = vmatpush1.bf16.msra.mxu0 0
    %116 = vmatprep.subr.bf16.mxu0 0
    %117 = vmatpush1.bf16.msra.mxu0 0
    %118 = vmatprep.subr.bf16.mxu0 0
    %119 = vmatpush1.bf16.msra.mxu0 0
    %120 = vmatprep.subr.bf16.mxu0 0
    %121 = vmatpush1.bf16.msra.mxu0 0
    %122 = vmatprep.subr.bf16.mxu0 0
    %123 = vmatpush1.bf16.msra.mxu0 0
    %124 = vmatprep.subr.bf16.mxu0 0
    %125 = vmatpush1.bf16.msra.mxu0 0
    %126 = vmatprep.subr.bf16.mxu0 0
    %127 = vmatpush1.bf16.msra.mxu0 0
    %128 = vmatprep.subr.bf16.mxu0 0
    %129 = vmatpush1.bf16.msra.mxu0 0
    %130 = vmatprep.subr.bf16.mxu0 0
    %131 = vmatpush1.bf16.msra.mxu0 0
    %132 = vmatprep.subr.bf16.mxu0 0
    %133 = vmatpush1.bf16.msra.mxu0 0
    %134 = vmatprep.subr.bf16.mxu0 0
    %135 = vmatpush1.bf16.msra.mxu0 0
    %136 = vmatprep.subr.bf16.mxu0 0
    %137 = vmatpush1.bf16.msra.mxu0 0
    %138 = vmatprep.subr.bf16.mxu0 0
    %139 = vmatpush1.bf16.msra.mxu0 0
    %140 = vmatprep.mubr.bf16.mxu0 0
    %141 = vmatmul.mubr.bf16.gmra.mrb[0].mxu0 %v106
    %v142 = vpop.f32.mrb[0].mxu0
    %v143 = vadd.f32 %v92, %v142
    %v144 = vpop.f32.mrb[0].mxu0
    %v145 = vpop.f32.mrb[0].mxu0
    %v146 = vadd.f32 %v92, %v145
    %v147 = vpop.f32.mrb[0].mxu0
    %148 = vdwg.mxu0
    %149 = vadd.xlane.f32.xlu0 %v143
    %v150 = vpop.xlane.xlu0 %149
    %151 = vadd.xlane.f32.xlu0 %v146
    %v152 = vpop.xlane.xlu0 %151
    %v153 = vmul.f32 %v143, %v143
    %v154 = vmul.f32 %v146, %v146
    %155 = vadd.xlane.f32.xlu0 %v153
    %v156 = vpop.xlane.xlu0 %155
    %157 = vadd.xlane.f32.xlu0 %v154
    %v158 = vpop.xlane.xlu0 %157
    %v159 = vmul.f32 %v150, 0.03125
    %v160 = vmul.f32 %v152, 0.03125
    %v161 = vmul.f32 %v156, 0.03125
    %v162 = vmul.f32 %v158, 0.03125
    %v163 = vmul.f32 %v159, %v159
    %v164 = vmul.f32 %v160, %v160
    %v165 = vsub.f32 %v161, %v163
    %v166 = vsub.f32 %v162, %v164
    %v167 = vmax.f32 %v165, 0.0
    %v168 = vmax.f32 %v166, 0.0
    %v169 = vadd.f32 %v167, 1e-05
    %v170 = vadd.f32 %v168, 1e-05
    %v171 = vrsqrt.pop %v169
    %v172 = vrsqrt.pop %v170
    %v173 = vsub.f32 %v143, %v159
    %v174 = vsub.f32 %v146, %v160
    %v175 = vmul.f32 %v173, %v171
    %v176 = vmul.f32 %v174, %v172
    %v177 = vlaneseq
    %v178 = vshrl.u32 %v177, 7
    %v179 = vsub.s32 1, %v178
    %v180 = vrot.slane %v85, %v179
    %v181 = vmul.f32 %v175, %v180
    %v182 = vmul.f32 %v176, %v180
    %v183 = vlaneseq
    %v184 = vshrl.u32 %v183, 7
    %v185 = vsub.s32 2, %v184
    %v186 = vrot.slane %v85, %v185
    %v187 = vadd.f32 %v181, %v186
    %v188 = vadd.f32 %v182, %v186
    %v189 = vmax.f32 %v187, 0.0
    %v190 = vmax.f32 %v188, 0.0
    %v191 = vpack.c.bf16 %v190, %v189
    %v192 = vld [vmem:[#allocation7] sm:$0xf]
    %v193 = vld [vmem:[#allocation7 + $0x4] sm:$0xf]
    %v194 = vld [vmem:[#allocation7 + $0x8] sm:$0xf]
    %v195 = vld [vmem:[#allocation7 + $0xc] sm:$0xf]
    %v196 = vld [vmem:[#allocation7 + $0x10] sm:$0xf]
    %v197 = vld [vmem:[#allocation7 + $0x14] sm:$0xf]
    %v198 = vld [vmem:[#allocation7 + $0x18] sm:$0xf]
    %v199 = vld [vmem:[#allocation7 + $0x1c] sm:$0xf]
    %v200 = vld [vmem:[#allocation7 + $0x20] sm:$0xf]
    %v201 = vld [vmem:[#allocation7 + $0x24] sm:$0xf]
    %v202 = vld [vmem:[#allocation7 + $0x28] sm:$0xf]
    %v203 = vld [vmem:[#allocation7 + $0x2c] sm:$0xf]
    %v204 = vld [vmem:[#allocation7 + $0x30] sm:$0xf]
    %v205 = vld [vmem:[#allocation7 + $0x34] sm:$0xf]
    %v206 = vld [vmem:[#allocation7 + $0x38] sm:$0xf]
    %v207 = vld [vmem:[#allocation7 + $0x3c] sm:$0xf]
    %v208 = vlaneseq
    %v209 = vshrl.u32 %v208, 7
    %v210 = vsub.s32 0, %v209
    %v211 = vrot.slane %v86, %v210
    %v228 = vunpack.c.l.b16 %v192
    %v229 = vunpack.c.l.b16 %v193
    %v230 = vunpack.c.l.b16 %v194
    %v231 = vunpack.c.l.b16 %v195
    %v232 = vunpack.c.l.b16 %v196
    %v233 = vunpack.c.l.b16 %v197
    %v234 = vunpack.c.l.b16 %v198
    %v235 = vunpack.c.l.b16 %v199
    %v236 = vunpack.c.l.b16 %v200
    %v237 = vunpack.c.l.b16 %v201
    %v238 = vunpack.c.l.b16 %v202
    %v239 = vunpack.c.l.b16 %v203
    %v240 = vunpack.c.l.b16 %v204
    %v241 = vunpack.c.l.b16 %v205
    %v242 = vunpack.c.l.b16 %v206
    %v243 = vunpack.c.l.b16 %v207
    %v244 = vpack.c.b16 %v229, %v228
    %v245 = vpack.c.b16 %v231, %v230
    %v246 = vpack.c.b16 %v233, %v232
    %v247 = vpack.c.b16 %v235, %v234
    %v248 = vpack.c.b16 %v237, %v236
    %v249 = vpack.c.b16 %v239, %v238
    %v250 = vpack.c.b16 %v241, %v240
    %v251 = vpack.c.b16 %v243, %v242
    %260 = vmatprep.subr.bf16.mxu0 0
    %261 = vmatpush1.bf16.msra.mxu0 %v244
    %262 = vmatprep.subr.bf16.mxu0 0
    %263 = vmatpush1.bf16.msra.mxu0 %v245
    %264 = vmatprep.subr.bf16.mxu0 0
    %265 = vmatpush1.bf16.msra.mxu0 %v246
    %266 = vmatprep.subr.bf16.mxu0 0
    %267 = vmatpush1.bf16.msra.mxu0 %v247
    %268 = vmatprep.subr.bf16.mxu0 0
    %269 = vmatpush1.bf16.msra.mxu0 %v248
    %270 = vmatprep.subr.bf16.mxu0 0
    %271 = vmatpush1.bf16.msra.mxu0 %v249
    %272 = vmatprep.subr.bf16.mxu0 0
    %273 = vmatpush1.bf16.msra.mxu0 %v250
    %274 = vmatprep.subr.bf16.mxu0 0
    %275 = vmatpush1.bf16.msra.mxu0 %v251
    %276 = vmatprep.subr.bf16.mxu0 0
    %277 = vmatpush1.bf16.msra.mxu0 0
    %278 = vmatprep.subr.bf16.mxu0 0
    %279 = vmatpush1.bf16.msra.mxu0 0
    %280 = vmatprep.subr.bf16.mxu0 0
    %281 = vmatpush1.bf16.msra.mxu0 0
    %282 = vmatprep.subr.bf16.mxu0 0
    %283 = vmatpush1.bf16.msra.mxu0 0
    %284 = vmatprep.subr.bf16.mxu0 0
    %285 = vmatpush1.bf16.msra.mxu0 0
    %286 = vmatprep.subr.bf16.mxu0 0
    %287 = vmatpush1.bf16.msra.mxu0 0
    %288 = vmatprep.subr.bf16.mxu0 0
    %289 = vmatpush1.bf16.msra.mxu0 0
    %290 = vmatprep.subr.bf16.mxu0 0
    %291 = vmatpush1.bf16.msra.mxu0 0
    %292 = vmatprep.mubr.bf16.mxu0 0
    %293 = vmatmul.mubr.bf16.gmra.mrb[0].mxu0 %v191
    %v294 = vpop.f32.mrb[0].mxu0
    %v295 = vadd.f32 %v211, %v294
    %v296 = vpop.f32.mrb[0].mxu0
    %v297 = vpop.f32.mrb[0].mxu0
    %v298 = vadd.f32 %v211, %v297
    %v299 = vpop.f32.mrb[0].mxu0
    %300 = vdwg.mxu0
    %301 = vadd.xlane.f32.xlu0 %v295
    %v302 = vpop.xlane.xlu0 %301
    %303 = vadd.xlane.f32.xlu0 %v298
    %v304 = vpop.xlane.xlu0 %303
    %v305 = vmul.f32 %v295, %v295
    %v306 = vmul.f32 %v298, %v298
    %307 = vadd.xlane.f32.xlu0 %v305
    %v308 = vpop.xlane.xlu0 %307
    %309 = vadd.xlane.f32.xlu0 %v306
    %v310 = vpop.xlane.xlu0 %309
    %v311 = vmul.f32 %v302, 0.03125
    %v312 = vmul.f32 %v304, 0.03125
    %v313 = vmul.f32 %v308, 0.03125
    %v314 = vmul.f32 %v310, 0.03125
    %v315 = vmul.f32 %v311, %v311
    %v316 = vmul.f32 %v312, %v312
    %v317 = vsub.f32 %v313, %v315
    %v318 = vsub.f32 %v314, %v316
    %v319 = vmax.f32 %v317, 0.0
    %v320 = vmax.f32 %v318, 0.0
    %v321 = vadd.f32 %v319, 1e-05
    %v322 = vadd.f32 %v320, 1e-05
    %v323 = vrsqrt.pop %v321
    %v324 = vrsqrt.pop %v322
    %v325 = vsub.f32 %v295, %v311
    %v326 = vsub.f32 %v298, %v312
    %v327 = vmul.f32 %v325, %v323
    %v328 = vmul.f32 %v326, %v324
    %v329 = vlaneseq
    %v330 = vshrl.u32 %v329, 7
    %v331 = vsub.s32 1, %v330
    %v332 = vrot.slane %v86, %v331
    %v333 = vmul.f32 %v327, %v332
    %v334 = vmul.f32 %v328, %v332
    %v335 = vlaneseq
    %v336 = vshrl.u32 %v335, 7
    %v337 = vsub.s32 2, %v336
    %v338 = vrot.slane %v86, %v337
    %v339 = vadd.f32 %v333, %v338
    %v340 = vadd.f32 %v334, %v338
    %v341 = vmax.f32 %v339, 0.0
    %v342 = vmax.f32 %v340, 0.0
    %v343 = vpack.c.bf16 %v342, %v341
    %v344 = vld [vmem:[#allocation8] sm:$0xf]
    %v345 = vld [vmem:[#allocation8 + $0x4] sm:$0xf]
    %v346 = vld [vmem:[#allocation8 + $0x8] sm:$0xf]
    %v347 = vld [vmem:[#allocation8 + $0xc] sm:$0xf]
    %v348 = vld [vmem:[#allocation8 + $0x10] sm:$0xf]
    %v349 = vld [vmem:[#allocation8 + $0x14] sm:$0xf]
    %v350 = vld [vmem:[#allocation8 + $0x18] sm:$0xf]
    %v351 = vld [vmem:[#allocation8 + $0x1c] sm:$0xf]
    %v352 = vld [vmem:[#allocation8 + $0x20] sm:$0xf]
    %v353 = vld [vmem:[#allocation8 + $0x24] sm:$0xf]
    %v354 = vld [vmem:[#allocation8 + $0x28] sm:$0xf]
    %v355 = vld [vmem:[#allocation8 + $0x2c] sm:$0xf]
    %v356 = vld [vmem:[#allocation8 + $0x30] sm:$0xf]
    %v357 = vld [vmem:[#allocation8 + $0x34] sm:$0xf]
    %v358 = vld [vmem:[#allocation8 + $0x38] sm:$0xf]
    %v359 = vld [vmem:[#allocation8 + $0x3c] sm:$0xf]
    %v360 = vld [vmem:[%s6] sm:$0x1]
    %v362 = vlaneseq
    %v363 = vshrl.u32 %v362, 7
    %v364 = vsub.s32 0, %v363
    %v365 = vrot.slane %v360, %v364
    %v383 = vunpack.c.l.b16 %v344
    %v384 = vunpack.c.l.b16 %v345
    %v385 = vunpack.c.l.b16 %v346
    %v386 = vunpack.c.l.b16 %v347
    %v387 = vunpack.c.l.b16 %v348
    %v388 = vunpack.c.l.b16 %v349
    %v389 = vunpack.c.l.b16 %v350
    %v390 = vunpack.c.l.b16 %v351
    %v391 = vunpack.c.l.b16 %v352
    %v392 = vunpack.c.l.b16 %v353
    %v393 = vunpack.c.l.b16 %v354
    %v394 = vunpack.c.l.b16 %v355
    %v395 = vunpack.c.l.b16 %v356
    %v396 = vunpack.c.l.b16 %v357
    %v397 = vunpack.c.l.b16 %v358
    %v398 = vunpack.c.l.b16 %v359
    %v399 = vpack.c.b16 %v384, %v383
    %v400 = vpack.c.b16 %v386, %v385
    %v401 = vpack.c.b16 %v388, %v387
    %v402 = vpack.c.b16 %v390, %v389
    %v403 = vpack.c.b16 %v392, %v391
    %v404 = vpack.c.b16 %v394, %v393
    %v405 = vpack.c.b16 %v396, %v395
    %v406 = vpack.c.b16 %v398, %v397
    %415 = vmatprep.subr.bf16.mxu0 0
    %416 = vmatpush1.bf16.msra.mxu0 %v399
    %417 = vmatprep.subr.bf16.mxu0 0
    %418 = vmatpush1.bf16.msra.mxu0 %v400
    %419 = vmatprep.subr.bf16.mxu0 0
    %420 = vmatpush1.bf16.msra.mxu0 %v401
    %421 = vmatprep.subr.bf16.mxu0 0
    %422 = vmatpush1.bf16.msra.mxu0 %v402
    %423 = vmatprep.subr.bf16.mxu0 0
    %424 = vmatpush1.bf16.msra.mxu0 %v403
    %425 = vmatprep.subr.bf16.mxu0 0
    %426 = vmatpush1.bf16.msra.mxu0 %v404
    %427 = vmatprep.subr.bf16.mxu0 0
    %428 = vmatpush1.bf16.msra.mxu0 %v405
    %429 = vmatprep.subr.bf16.mxu0 0
    %430 = vmatpush1.bf16.msra.mxu0 %v406
    %431 = vmatprep.subr.bf16.mxu0 0
    %432 = vmatpush1.bf16.msra.mxu0 0
    %433 = vmatprep.subr.bf16.mxu0 0
    %434 = vmatpush1.bf16.msra.mxu0 0
    %435 = vmatprep.subr.bf16.mxu0 0
    %436 = vmatpush1.bf16.msra.mxu0 0
    %437 = vmatprep.subr.bf16.mxu0 0
    %438 = vmatpush1.bf16.msra.mxu0 0
    %439 = vmatprep.subr.bf16.mxu0 0
    %440 = vmatpush1.bf16.msra.mxu0 0
    %441 = vmatprep.subr.bf16.mxu0 0
    %442 = vmatpush1.bf16.msra.mxu0 0
    %443 = vmatprep.subr.bf16.mxu0 0
    %444 = vmatpush1.bf16.msra.mxu0 0
    %445 = vmatprep.subr.bf16.mxu0 0
    %446 = vmatpush1.bf16.msra.mxu0 0
    %447 = vmatprep.mubr.bf16.mxu0 0
    %448 = vmatmul.mubr.bf16.gmra.mrb[0].mxu0 %v343
    %v449 = vpop.f32.mrb[0].mxu0
    %v450 = vadd.f32 %v365, %v449
    %v451 = vpop.f32.mrb[0].mxu0
    %v452 = vpop.f32.mrb[0].mxu0
    %v453 = vadd.f32 %v365, %v452
    %v454 = vpop.f32.mrb[0].mxu0
    %455 = vdwg.mxu0
    %456 = vst [vmem:[#allocation10] sm:$0xff] %v450
    %457 = vst [vmem:[#allocation10 + $0x8] sm:$0xff] %v453
    // Predicated region
    $region46: #{tpu_custom_call.1} parent=1 // pred_check
      _
    $region47: #{tpu_custom_call.1} parent=1 // pred_check_branch
      %459 = sbr.rel (0) target = $region49
    $region48: #{tpu_custom_call.1} parent=1 // pred_region
      %s461 = ssub.s32 256, 256
      %462 = vsyncadd [#allocation4], %s461
      %s463 = sshll.u32 [#allocation10], 4
      %s464 = int_to_ptr.vmem [resolvable:$true] %s463
      %469 = dma.vmem_to_hbm [thread:$0]  %s464, 256, %s7, [#allocation4], 128, 128, 8
    $region49: #{tpu_custom_call.1} parent=1 // pred_fallthru
      _
    // Predicated region
    $region50: #{tpu_custom_call.1} parent=1 // pred_check
      _
    $region51: #{tpu_custom_call.1} parent=1 // pred_check_branch
      %471 = sbr.rel (0) target = $region53
    $region52: #{tpu_custom_call.1} parent=1 // pred_region
      %472 = dma.done [#allocation4], 256
    $region53: #{tpu_custom_call.1} parent=1 // pred_fallthru
      _
    %473 = vsyncpa [#allocation3], 1
    %474 = vsyncpa [#allocation6], 1
    %475 = vsyncpa [#allocation9], 1
    %476 = vsyncpa [#allocation4], 1

</llo_original>
